<compile_context>
chip_gen: v7x
topology: tpu7x:2x2x1
jax: 0.10.0
libtpu: 0.0.40
codegen_flags: <defaults>
</compile_context>

<pallas_src>
import functools
import math

import jax
import jax.numpy as jnp
from jax.experimental import pallas as pl
from jax.experimental.pallas import tpu as pltpu


def _round_up(x: int, m: int) -> int:
    return ((x + m - 1) // m) * m


def _sinusoidal_kernel(t_ref, freq_ref, o_ref, *, half_dim: int, dim: int):
    # t_ref:    (TB, 1)    f32   diffusion timesteps (sublane axis = batch)
    # freq_ref: (1, dim)   f32   duplicated frequency row [f..f, f..f, (0 pad)]
    # o_ref:    (TB, dim)  out dtype
    emb = t_ref[...] * freq_ref[...]                      # (TB, dim) via broadcast
    lane = jax.lax.broadcasted_iota(jnp.int32, emb.shape, 1)
    # sin on the first half of the lanes, cos on the second half -> single store.
    out = jnp.where(lane < half_dim, jnp.sin(emb), jnp.cos(emb))
    if dim % 2 == 1:
        # F.pad(embeddings, (0, 1, 0, 0)) -> trailing zero column (freq there is 0,
        # so cos(0)=1 must be masked back to 0).
        out = jnp.where(lane < 2 * half_dim, out, jnp.zeros_like(out))
    o_ref[...] = out.astype(o_ref.dtype)


def sinusoidal_position_embeddings(
    time: jax.Array,
    dim: int,
    *,
    block_b: int = 1024,
    out_dtype=jnp.float32,
) -> jax.Array:
    """Pallas equivalent of SinusoidalPositionEmbeddings(dim)(time)."""
    if dim < 4:
        # PyTorch would divide by zero (half_dim - 1 == 0); make it an explicit error.
        raise ValueError("dim must be >= 4 for sinusoidal position embeddings")

    # --- glue: replicate the PyTorch shape normalization ---
    if time.ndim == 0:
        time = time[None]                       # unsqueeze(0)
    elif time.ndim == 2 and time.shape[1] == 1:
        time = jnp.squeeze(time, axis=-1)       # squeeze(-1)
    elif time.ndim != 1:
        raise ValueError(
            f"expected scalar, (B,) or (B, 1) timesteps, got shape {time.shape}"
        )
    time = time.astype(jnp.float32)
    batch = time.shape[0]

    half_dim = dim // 2
    scale = math.log(10000.0) / (half_dim - 1)
    freqs = jnp.exp(jnp.arange(half_dim, dtype=jnp.float32) * -scale)
    # Duplicated frequency row so the kernel can do a single full-width store:
    # lanes [0, half_dim) and [half_dim, 2*half_dim) both carry f; odd-dim tail is 0.
    parts = [freqs, freqs]
    if dim % 2 == 1:
        parts.append(jnp.zeros((dim - 2 * half_dim,), dtype=jnp.float32))
    freq_full = jnp.concatenate(parts).reshape(1, dim)

    # --- batch tiling: tile-count first, then tile size (bounds padding to <8 rows/tile)
    rb = _round_up(batch, 8)
    # Cap the tile so double-buffered output tiles stay well under scoped VMEM on all
    # generations (v5e 16 MiB default scoped is the tightest).
    vmem_budget_bytes = 8 * 1024 * 1024
    vmem_rows_cap = max(8, (vmem_budget_bytes // (2 * dim * 4)) // 8 * 8)
    eff_block_b = max(8, min(block_b, vmem_rows_cap))
    n_tiles = pl.cdiv(rb, eff_block_b)
    tb = _round_up(pl.cdiv(rb, n_tiles), 8)
    padded_b = n_tiles * tb

    t2d = time.reshape(batch, 1)
    if padded_b != batch:
        t2d = jnp.pad(t2d, ((0, padded_b - batch), (0, 0)))

    kernel = functools.partial(_sinusoidal_kernel, half_dim=half_dim, dim=dim)

    # TODO(synk): for dim <= 64 and very large B, a further win is packing g=128//dim
    # timesteps per 128-lane output row (fully unmasked stores); not done here.
    out = pl.pallas_call(
        kernel,
        out_shape=jax.ShapeDtypeStruct((padded_b, dim), out_dtype),
        grid_spec=pltpu.PrefetchScalarGridSpec(
            num_scalar_prefetch=0,
            grid=(n_tiles,),
            in_specs=[
                pl.BlockSpec((tb, 1), lambda i: (i, 0)),       # timesteps, tiled on batch
                pl.BlockSpec((1, dim), lambda i: (0, 0)),      # duplicated freq row, resident
            ],
            out_specs=pl.BlockSpec((tb, dim), lambda i: (i, 0)),
        ),
        compiler_params=pltpu.CompilerParams(
            dimension_semantics=("parallel",),
        ),
    )(t2d, freq_full)

    return out[:batch]


def _reference(time: jax.Array, dim: int) -> jax.Array:
    """Pure-JAX reference mirroring the PyTorch forward."""
    if time.ndim == 0:
        time = time[None]
    elif time.ndim > 1 and time.shape[1] == 1:
        time = jnp.squeeze(time, axis=-1)
    time = time.astype(jnp.float32)
    half_dim = dim // 2
    scale = math.log(10000.0) / (half_dim - 1)
    freqs = jnp.exp(jnp.arange(half_dim, dtype=jnp.float32) * -scale)
    emb = time[:, None] * freqs[None, :]
    emb = jnp.concatenate([jnp.sin(emb), jnp.cos(emb)], axis=-1)
    if dim % 2 == 1:
        emb = jnp.pad(emb, ((0, 0), (0, 1)))
    return emb


if __name__ == "__main__":
    key = jax.random.PRNGKey(0)
    batch = 8
    dim = 32

    # Realistic diffusion timesteps, shaped (B, 1) (exercises the squeeze(-1) branch).
    t_big = jax.random.randint(key, (batch, 1), 0, 1000).astype(jnp.int32)

    out = jax.block_until_ready(sinusoidal_position_embeddings(t_big, dim))
    ref = _reference(t_big, dim)
    assert out.shape == (batch, dim), out.shape
    assert out.dtype == jnp.float32, out.dtype
    # Phases reach ~1000 rad here; Mosaic and XLA sin/cos range reduction may differ by
    # ~1e-4 for such large arguments, so compare at a tolerance above that level.
    assert jnp.allclose(out, ref, atol=1e-3, rtol=0.0), float(jnp.max(jnp.abs(out - ref)))

    # Tight-tolerance check on small-magnitude timesteps (no range-reduction ambiguity).
    t_small = jnp.arange(batch, dtype=jnp.float32)       # 1-D float timesteps
    out_s = jax.block_until_ready(sinusoidal_position_embeddings(t_small, dim))
    ref_s = _reference(t_small, dim)
    assert jnp.allclose(out_s, ref_s, atol=1e-5, rtol=1e-5)

    # Odd embedding dim: trailing zero column path.
    dim_odd = 33
    out_o = jax.block_until_ready(sinusoidal_position_embeddings(t_small, dim_odd))
    ref_o = _reference(t_small, dim_odd)
    assert out_o.shape == (batch, dim_odd), out_o.shape
    assert jnp.allclose(out_o, ref_o, atol=1e-5, rtol=1e-5)
    assert jnp.all(out_o[:, -1] == 0.0)

    # Awkward batch size: tile-count-first padding path (multiple grid steps).
    batch_awk = 520
    t_awk = jax.random.randint(jax.random.PRNGKey(1), (batch_awk,), 0, 1000)
    out_a = jax.block_until_ready(
        sinusoidal_position_embeddings(t_awk, dim, block_b=256)
    )
    ref_a = _reference(t_awk, dim)
    assert out_a.shape == (batch_awk, dim), out_a.shape
    assert jnp.allclose(out_a, ref_a, atol=1e-3, rtol=0.0)

    print("KERNEL_OK")
</pallas_src>

<mosaic_0001>
module attributes {stable_mosaic.version = 11 : i64} {
  func.func @_sinusoidal_kernel(%arg0: i32, %arg1: memref<8x1xf32, #tpu.memory_space<vmem>>, %arg2: memref<1x32xf32, #tpu.memory_space<vmem>>, %arg3: memref<8x32xf32, #tpu.memory_space<vmem>>) attributes {dimension_semantics = [#tpu.dimension_semantics<parallel>], iteration_bounds = array<i64: 1>, scalar_prefetch = 0 : i64, scratch_operands = 0 : i64, tpu.core_type = #tpu.core_type<tc>, window_params = [{transform_indices = @transform_0, window_bounds = array<i64: 8, 1>}, {pipeline_mode = #tpu.pipeline_mode<synchronous>, transform_indices = @transform_1, window_bounds = array<i64: 1, 32>}, {transform_indices = @transform_2, window_bounds = array<i64: 8, 32>}]} {
    %c0 = arith.constant 0 : index
    %c0_0 = arith.constant 0 : index
    %0 = vector.load %arg1[%c0, %c0_0] : memref<8x1xf32, #tpu.memory_space<vmem>>, vector<8x1xf32>
    %c0_1 = arith.constant 0 : index
    %c0_2 = arith.constant 0 : index
    %1 = vector.load %arg2[%c0_1, %c0_2] : memref<1x32xf32, #tpu.memory_space<vmem>>, vector<1x32xf32>
    %2 = vector.broadcast %0 : vector<8x1xf32> to vector<8x32xf32>
    %3 = vector.broadcast %1 : vector<1x32xf32> to vector<8x32xf32>
    %4 = arith.mulf %2, %3 : vector<8x32xf32>
    %5 = tpu.iota {dimensions = array<i32: 1>} : vector<8x32xi32>
    %c16_i32 = arith.constant 16 : i32
    %6 = vector.broadcast %c16_i32 : i32 to vector<8x32xi32>
    %7 = arith.cmpi slt, %5, %6 : vector<8x32xi32>
    %8 = math.sin %4 : vector<8x32xf32>
    %9 = math.cos %4 : vector<8x32xf32>
    %10 = arith.select %7, %8, %9 : vector<8x32xi1>, vector<8x32xf32>
    %c0_3 = arith.constant 0 : index
    %c0_4 = arith.constant 0 : index
    %11 = vector.load %arg3[%c0_3, %c0_4] : memref<8x32xf32, #tpu.memory_space<vmem>>, vector<8x32xf32>
    tpu.vector_store %arg3[%c0_3, %c0_4], %10 {strides = array<i32>} : memref<8x32xf32, #tpu.memory_space<vmem>>, vector<8x32xf32>,
    return
  }
  func.func @transform_0(%arg0: i32) -> (i32, i32) {
    %c0_i32 = arith.constant 0 : i32
    %c0_i32_0 = arith.constant 0 : i32
    return %arg0, %c0_i32 : i32, i32
  }
  func.func @transform_1(%arg0: i32) -> (i32, i32) {
    %c0_i32 = arith.constant 0 : i32
    %c0_i32_0 = arith.constant 0 : i32
    %c0_i32_1 = arith.constant 0 : i32
    return %c0_i32, %c0_i32_0 : i32, i32
  }
  func.func @transform_2(%arg0: i32) -> (i32, i32) {
    %c0_i32 = arith.constant 0 : i32
    %c0_i32_0 = arith.constant 0 : i32
    return %arg0, %c0_i32 : i32, i32
  }
}

</mosaic_0001>

<llo_original>
// kernel: tpu_custom_call.1
$region0: #{tpu_custom_call.1}
  #allocation0 [shape = 'u32[]', space=smem, size = 0x4, offset = 0x4, fixed_abs, tag = 'smem constant byte address 0x4 - core index']
  #allocation1 [shape = 'u32[144,128]{1,0:T(1,128)}', space=vmem, size = 0x12000, scoped, tag = 'internal scratch']
  %s0 = inlined_call_operand.vmem [shape: f32[8,1], index: 0, kind: input, shape index: {}]
  %s1 = inlined_call_operand.vmem [shape: f32[1,32], index: 1, kind: input, shape index: {}]
  %s2 = inlined_call_operand.hbm [shape: f32[8,32], index: 2, kind: output, shape index: {}]
  %s3 = sld [smem:[#allocation0]]
  $region18: #{tpu_custom_call.1} parent=0
    _
  %s5 = ssub.s32 1, %s3
  %s6 = scalar_select 0, %s5, %s3
  $region1: #{tpu_custom_call.1} parent=0
    #allocation2 [shape = 'u8[4096]{0}', space=vmem, size = 0x1000, scoped, tag = 'output window, operand 0, single buffered']
    #allocation3 [shape = 's32[1]{0}', space=sflag, size = 0x4, scoped, tag = 'scoped memory for tpu_custom_call.1']
    %7 = vsyncpa [#allocation3], 0
    // Predicated region
    $region2: #{tpu_custom_call.1} parent=1 // pred_check
      _
    $region3: #{tpu_custom_call.1} parent=1 // pred_check_branch
      %9 = sbr.rel (0) target = $region5
    $region4: #{tpu_custom_call.1} parent=1 // pred_region
      _
    $region5: #{tpu_custom_call.1} parent=1 // pred_fallthru
      _
    // Predicated region
    $region6: #{tpu_custom_call.1} parent=1 // pred_check
      _
    $region7: #{tpu_custom_call.1} parent=1 // pred_check_branch
      %11 = sbr.rel (0) target = $region9
    $region8: #{tpu_custom_call.1} parent=1 // pred_region
      _
    $region9: #{tpu_custom_call.1} parent=1 // pred_fallthru
      _
    %v12 = vld [vmem:[%s0] sm:$0xff]
    %v13 = vld [vmem:[%s1] sm:$0x1]
    %15 = vset.pattern.permute.xlu0 0
    %16 = vperm.xlu0 %15, %v12
    %v17 = vpop.permute.xlu0 %16
    %v20 = vlaneseq
    %v21 = vshrl.u32 %v20, 7
    %v22 = vsub.s32 0, %v21
    %v23 = vrot.slane %v13, %v22
    %v25 = vmul.f32 %v17, %v23
    %v26 = vlaneseq
    %v27 = vand.u32 %v26, 127
    %vm28 = vcmp.lt.s32.totalorder %v27, 16
    %v29 = vand.u32 2147483647, %v25
    %vm30 = vcmp.le.f32.partialorder %v29, 0.7853982
    %vm31 = vcmp.lt.s32.totalorder %v25, 0
    %v32 = vand.u32 %v25, 2139095040
    %v33 = vshrl.u32 %v32, 23
    %v34 = vsub.s32 %v33, 127
    %v35 = vand.u32 2147483647, %v25
    %v36 = vand.u32 %v35, 8388607
    %v37 = vor.u32 %v36, 8388608
    %v38 = vsub.s32 0, %v37
    %v39 = vadd.s32 %v34, 1
    %vm40 = vcmp.gt.s32.totalorder %v39, 0
    %v41 = vsel %vm40, %v39, 0
    %v42 = vshrl.u32 %v41, 5
    %v43 = vand.u32 %v41, 31
    %v44 = vsub.s32 32, %v43
    %v45 = vshrl.u32 683565275, %v44
    %v46 = vshll.u32 683565275, %v43
    %v47 = vshrl.u32 2475754826, %v44
    %v48 = vor.u32 %v46, %v47
    %v49 = vshll.u32 2475754826, %v43
    %v50 = vshrl.u32 2131351028, %v44
    %v51 = vor.u32 %v49, %v50
    %v52 = vshll.u32 2131351028, %v43
    %v53 = vshrl.u32 2102212464, %v44
    %v54 = vor.u32 %v52, %v53
    %v55 = vshll.u32 2102212464, %v43
    %v56 = vshrl.u32 920167782, %v44
    %v57 = vor.u32 %v55, %v56
    %v58 = vshll.u32 920167782, %v43
    %v59 = vshrl.u32 1326507024, %v44
    %v60 = vor.u32 %v58, %v59
    %vm61 = vcmp.lt.s32.totalorder %v42, 1
    %vm62 = vcmp.lt.s32.totalorder %v42, 2
    %vm63 = vcmp.lt.s32.totalorder %v42, 3
    %vm64 = vcmp.lt.s32.totalorder %v42, 4
    %v65 = vsel %vm61, %v45, %v48
    %v66 = vsel %vm64, %v54, 2102212464
    %v67 = vsel %vm63, %v51, %v66
    %v68 = vsel %vm62, %v65, %v67
    %v69 = vsel %vm61, %v48, %v51
    %v70 = vsel %vm64, %v57, 920167782
    %v71 = vsel %vm63, %v54, %v70
    %v72 = vsel %vm62, %v69, %v71
    %v73 = vsel %vm61, %v51, %v54
    %v74 = vsel %vm64, %v60, 1326507024
    %v75 = vsel %vm63, %v57, %v74
    %v76 = vsel %vm62, %v73, %v75
    %v77 = vshll.u32 %v37, 8
    %v78 = vmul.u32.u64.compose %v77, %v76
    %v79 = vextract.low.u32 %v78
    %v80 = vextract.high.u32 %v78
    %v81 = vmul.u32.u64.compose %v77, %v72
    %v82 = vextract.low.u32 %v81
    %v83 = vextract.high.u32 %v81
    %v84 = vmul.u32 %v77, %v68
    %v85 = vadd.s32 %v80, %v82
    %vm86 = vc.u32 %v80, %v82
    %v87 = vadd.s32 %v83, 1
    %v88 = vsel %vm86, %v87, %v83
    %v89 = vadd.s32 %v84, %v88
    %v90 = vadd.s32 %v89, 536870912
    %v91 = vshrl.u32 %v90, 30
    %v92 = vshll.u32 %v91, 30
    %v93 = vsub.s32 %v89, %v92
    %vm94 = vcmp.lt.s32.totalorder %v93, 0
    %v95 = vsub.s32 0, %v93
    %v96 = vsel %vm94, %v95, %v93
    %v97 = vclz %v96
    %v98 = vsub.s32 %v97, 2
    %vm99 = vcmp.gt.s32.totalorder 0, %v98
    %v100 = vsel %vm99, 0, %v98
    %v101 = vsub.s32 32, %v100
    %v102 = vshll.u32 %v93, %v100
    %v103 = vshrl.u32 %v85, %v101
    %v104 = vor.u32 %v102, %v103
    %v105 = vsub.s32 4294967266, %v100
    %v106 = vadd.s32 %v105, 127
    %v107 = vshll.u32 %v106, 23
    %v108 = vor.u32 4788187, %v107
    %v109 = vand.u32 2147483647, %v108
    %v111 = vcvt.s32.f32 %v104
    %v112 = vmul.f32 %v111, %v109
    %v113 = vxor.u32 %v112, 2147483648
    %v114 = vsel %vm31, %v113, %v112
    %v115 = vsub.s32 4, %v91
    %v116 = vsel %vm31, %v115, %v91
    %v117 = vsel %vm30, %v25, %v114
    %v118 = vsel %vm30, 0, %v116
    %v119 = vcosq.f32.pop %v117
    %v120 = vsinq.f32.pop %v117
    %vm121 = vweird.f32 %v25
    %v122 = vadd.s32 %v118, 3
    %v123 = vand.u32 %v122, 3
    %vm124 = vcmp.lt.s32.totalorder %v123, 2
    %vm125 = vcmp.eq.s32.totalorder %v123, 0
    %v126 = vxor.u32 %v120, 2147483648
    %v127 = vsel %vm125, %v119, %v126
    %vm128 = vcmp.eq.s32.totalorder %v123, 2
    %v129 = vxor.u32 %v119, 2147483648
    %v130 = vsel %vm128, %v129, %v120
    %v131 = vsel %vm124, %v127, %v130
    %v132 = vsel %vm121, nan, %v131
    %v133 = vand.u32 2147483647, %v25
    %vm134 = vcmp.le.f32.partialorder %v133, 0.7853982
    %vm135 = vcmp.lt.s32.totalorder %v25, 0
    %v136 = vand.u32 %v25, 2139095040
    %v137 = vshrl.u32 %v136, 23
    %v138 = vsub.s32 %v137, 127
    %v139 = vand.u32 2147483647, %v25
    %v140 = vand.u32 %v139, 8388607
    %v141 = vor.u32 %v140, 8388608
    %v142 = vsub.s32 0, %v141
    %v143 = vadd.s32 %v138, 1
    %vm144 = vcmp.gt.s32.totalorder %v143, 0
    %v145 = vsel %vm144, %v143, 0
    %v146 = vshrl.u32 %v145, 5
    %v147 = vand.u32 %v145, 31
    %v148 = vsub.s32 32, %v147
    %v149 = vshrl.u32 683565275, %v148
    %v150 = vshll.u32 683565275, %v147
    %v151 = vshrl.u32 2475754826, %v148
    %v152 = vor.u32 %v150, %v151
    %v153 = vshll.u32 2475754826, %v147
    %v154 = vshrl.u32 2131351028, %v148
    %v155 = vor.u32 %v153, %v154
    %v156 = vshll.u32 2131351028, %v147
    %v157 = vshrl.u32 2102212464, %v148
    %v158 = vor.u32 %v156, %v157
    %v159 = vshll.u32 2102212464, %v147
    %v160 = vshrl.u32 920167782, %v148
    %v161 = vor.u32 %v159, %v160
    %v162 = vshll.u32 920167782, %v147
    %v163 = vshrl.u32 1326507024, %v148
    %v164 = vor.u32 %v162, %v163
    %vm165 = vcmp.lt.s32.totalorder %v146, 1
    %vm166 = vcmp.lt.s32.totalorder %v146, 2
    %vm167 = vcmp.lt.s32.totalorder %v146, 3
    %vm168 = vcmp.lt.s32.totalorder %v146, 4
    %v169 = vsel %vm165, %v149, %v152
    %v170 = vsel %vm168, %v158, 2102212464
    %v171 = vsel %vm167, %v155, %v170
    %v172 = vsel %vm166, %v169, %v171
    %v173 = vsel %vm165, %v152, %v155
    %v174 = vsel %vm168, %v161, 920167782
    %v175 = vsel %vm167, %v158, %v174
    %v176 = vsel %vm166, %v173, %v175
    %v177 = vsel %vm165, %v155, %v158
    %v178 = vsel %vm168, %v164, 1326507024
    %v179 = vsel %vm167, %v161, %v178
    %v180 = vsel %vm166, %v177, %v179
    %v181 = vshll.u32 %v141, 8
    %v182 = vmul.u32.u64.compose %v181, %v180
    %v183 = vextract.low.u32 %v182
    %v184 = vextract.high.u32 %v182
    %v185 = vmul.u32.u64.compose %v181, %v176
    %v186 = vextract.low.u32 %v185
    %v187 = vextract.high.u32 %v185
    %v188 = vmul.u32 %v181, %v172
    %v189 = vadd.s32 %v184, %v186
    %vm190 = vc.u32 %v184, %v186
    %v191 = vadd.s32 %v187, 1
    %v192 = vsel %vm190, %v191, %v187
    %v193 = vadd.s32 %v188, %v192
    %v194 = vadd.s32 %v193, 536870912
    %v195 = vshrl.u32 %v194, 30
    %v196 = vshll.u32 %v195, 30
    %v197 = vsub.s32 %v193, %v196
    %vm198 = vcmp.lt.s32.totalorder %v197, 0
    %v199 = vsub.s32 0, %v197
    %v200 = vsel %vm198, %v199, %v197
    %v201 = vclz %v200
    %v202 = vsub.s32 %v201, 2
    %vm203 = vcmp.gt.s32.totalorder 0, %v202
    %v204 = vsel %vm203, 0, %v202
    %v205 = vsub.s32 32, %v204
    %v206 = vshll.u32 %v197, %v204
    %v207 = vshrl.u32 %v189, %v205
    %v208 = vor.u32 %v206, %v207
    %v209 = vsub.s32 4294967266, %v204
    %v210 = vadd.s32 %v209, 127
    %v211 = vshll.u32 %v210, 23
    %v212 = vor.u32 4788187, %v211
    %v213 = vand.u32 2147483647, %v212
    %v215 = vcvt.s32.f32 %v208
    %v216 = vmul.f32 %v215, %v213
    %v217 = vxor.u32 %v216, 2147483648
    %v218 = vsel %vm135, %v217, %v216
    %v219 = vsub.s32 4, %v195
    %v220 = vsel %vm135, %v219, %v195
    %v221 = vsel %vm134, %v25, %v218
    %v222 = vsel %vm134, 0, %v220
    %v223 = vcosq.f32.pop %v221
    %v224 = vsinq.f32.pop %v221
    %vm225 = vweird.f32 %v25
    %v226 = vand.u32 %v222, 3
    %vm227 = vcmp.lt.s32.totalorder %v226, 2
    %vm228 = vcmp.eq.s32.totalorder %v226, 0
    %v229 = vxor.u32 %v224, 2147483648
    %v230 = vsel %vm228, %v223, %v229
    %vm231 = vcmp.eq.s32.totalorder %v226, 2
    %v232 = vxor.u32 %v223, 2147483648
    %v233 = vsel %vm231, %v232, %v224
    %v234 = vsel %vm227, %v230, %v233
    %v235 = vsel %vm225, nan, %v234
    %v236 = vsel %vm28, %v132, %v235
    %vm237 = vcmask 261120
    %238 = vst.msk [vmem:[#allocation2] sm:$0xff] %vm237, %v236
    // Predicated region
    $region10: #{tpu_custom_call.1} parent=1 // pred_check
      _
    $region11: #{tpu_custom_call.1} parent=1 // pred_check_branch
      %240 = sbr.rel (0) target = $region13
    $region12: #{tpu_custom_call.1} parent=1 // pred_region
      %s242 = ssub.s32 128, 128
      %243 = vsyncadd [#allocation3], %s242
      %s245 = sshll.u32 [#allocation2], 4
      %s246 = int_to_ptr.vmem [resolvable:$true] %s245
      %248 = dma.vmem_to_hbm [thread:$0]  %s246, 128, %s2, [#allocation3]
    $region13: #{tpu_custom_call.1} parent=1 // pred_fallthru
      _
    // Predicated region
    $region14: #{tpu_custom_call.1} parent=1 // pred_check
      _
    $region15: #{tpu_custom_call.1} parent=1 // pred_check_branch
      %250 = sbr.rel (0) target = $region17
    $region16: #{tpu_custom_call.1} parent=1 // pred_region
      %251 = dma.done [#allocation3], 128
    $region17: #{tpu_custom_call.1} parent=1 // pred_fallthru
      _
    %252 = vsyncpa [#allocation3], 1

</llo_original>
